<compile_context>
chip_gen: v7x
topology: tpu7x:2x2x1
jax: 0.10.0
libtpu: 0.0.40
codegen_flags: <defaults>
</compile_context>

<pallas_src>
import jax
import jax.numpy as jnp
from jax.experimental import pallas as pl
from jax.experimental.pallas import tpu as pltpu

IN_F = 4     # real CartPole observation features
IN_P = 8     # padded input rows: 0..3 features, 4 = ones (bias carrier), 5..7 zero
HID = 32     # real hidden width
HID_P = 40   # padded hidden rows: 0..31 real, 32 = ones carrier, 33..39 zero
OUT_P = 8    # padded fc3 output rows; only row 0 (logit difference) is used


def cp0_kernel(x_ref, w1_ref, w2_ref, w3_ref, o_ref):
    # Everything is batch-in-lanes (last dim = batch tile of bb columns).
    x = x_ref[...]                                                  # [8,  bb] f32
    # fc1 + ReLU (bias folded via ones-carrier column of w1p / row 4 of x)
    h1 = jnp.maximum(
        jnp.dot(w1_ref[...], x, preferred_element_type=jnp.float32), 0.0)   # [40, bb]
    # fc2 + ReLU (bias folded; row 32 of h1 is exactly 1.0 by construction)
    h2 = jnp.maximum(
        jnp.dot(w2_ref[...], h1, preferred_element_type=jnp.float32), 0.0)  # [40, bb]
    # fc3 emits the logit difference d = l0 - l1 in row 0 (bias diff folded).
    d = jnp.dot(w3_ref[...], h2, preferred_element_type=jnp.float32)        # [8,  bb]
    z = d[0:1, :]                                                   # [1, bb] = l0 - l1
    # 2-class softmax == sigmoid of the logit difference.
    p0 = 1.0 / (1.0 + jnp.exp(-z))
    p1 = 1.0 - p0                                                   # sums to 1 exactly
    o_ref[...] = jnp.concatenate([p0, p1], axis=0).astype(o_ref.dtype)  # [2, bb]


def cp0_forward(x, packed_params, block_b=2048):
    """x: [B, 4] float32 -> probs [B, 2] float32 (softmax over the 2 actions)."""
    w1p, w2p, w3p = packed_params
    B, F = x.shape
    assert F == IN_F

    # Batch tile (in lanes): multiple of 128, capped at block_b, and >=2 grid
    # steps whenever the batch spans >=2 lane-chunks (so the "parallel" batch
    # axis can actually shard across v7x's two TensorCores).
    n128 = max(1, pl.cdiv(B, 128))
    max_chunks = max(1, block_b // 128)
    min_steps = 2 if n128 >= 2 else 1
    steps = max(min_steps, pl.cdiv(n128, max_chunks))
    bb = 128 * pl.cdiv(n128, steps)
    Bp = bb * steps

    # Lane-dense transposed input: [8, Bp], rows 0..3 = x^T, row 4 = 1.0.
    xt = jnp.zeros((IN_P, Bp), jnp.float32)
    xt = xt.at[:IN_F, :B].set(x.T.astype(jnp.float32))
    xt = xt.at[IN_F, :].set(1.0)

    resident = lambda shape: pl.BlockSpec(shape, lambda i: (0, 0))

    out = pl.pallas_call(
        cp0_kernel,
        out_shape=jax.ShapeDtypeStruct((2, Bp), jnp.float32),
        grid=(steps,),
        in_specs=[
            pl.BlockSpec((IN_P, bb), lambda i: (0, i)),   # x streams over batch lanes
            resident(w1p.shape),                          # weights stay VMEM-resident
            resident(w2p.shape),
            resident(w3p.shape),
        ],
        out_specs=pl.BlockSpec((2, bb), lambda i: (0, i)),
        compiler_params=pltpu.CompilerParams(
            dimension_semantics=("parallel",)),           # 2 TCs on v7x
    )(xt, w1p, w2p, w3p)

    return out[:, :B].T                                   # [B, 2]


def init_params(key):
    """Matches CP0Model._initialize_weights: weights ~ N(0, 0.01), biases ~ N(0, 1).
    Weights are kept in PyTorch [out, in] layout."""
    k = jax.random.split(key, 6)
    w1 = 0.01 * jax.random.normal(k[0], (HID, IN_F), jnp.float32)
    b1 = jax.random.normal(k[1], (HID,), jnp.float32)
    w2 = 0.01 * jax.random.normal(k[2], (HID, HID), jnp.float32)
    b2 = jax.random.normal(k[3], (HID,), jnp.float32)
    w3 = 0.01 * jax.random.normal(k[4], (2, HID), jnp.float32)
    b3 = jax.random.normal(k[5], (2,), jnp.float32)
    return (w1, b1, w2, b2, w3, b3)


def pack_params(raw):
    """Pack PyTorch-layout params into the transposed, bias-folded f32 layout.

    w1p [40,  8]: [:32,:4]=W1, [:32,4]=b1, [32,4]=1.0 (propagates the ones row).
    w2p [40, 40]: [:32,:32]=W2, [:32,32]=b2, [32,32]=1.0.
    w3p [ 8, 40]: [0,:32]=w3[0]-w3[1], [0,32]=b3[0]-b3[1]  (logit difference).
    """
    w1, b1, w2, b2, w3, b3 = raw
    w1p = jnp.zeros((HID_P, IN_P), jnp.float32)
    w1p = w1p.at[:HID, :IN_F].set(w1).at[:HID, IN_F].set(b1).at[HID, IN_F].set(1.0)

    w2p = jnp.zeros((HID_P, HID_P), jnp.float32)
    w2p = w2p.at[:HID, :HID].set(w2).at[:HID, HID].set(b2).at[HID, HID].set(1.0)

    w3p = jnp.zeros((OUT_P, HID_P), jnp.float32)
    w3p = w3p.at[0, :HID].set(w3[0] - w3[1]).at[0, HID].set(b3[0] - b3[1])
    return (w1p, w2p, w3p)


def cp0_reference(x, raw):
    """Pure-JAX f32 reference of the PyTorch forward."""
    w1, b1, w2, b2, w3, b3 = raw
    h1 = jnp.maximum(x @ w1.T + b1, 0.0)
    h2 = jnp.maximum(h1 @ w2.T + b2, 0.0)
    return jax.nn.softmax(h2 @ w3.T + b3, axis=1)


if __name__ == "__main__":
    key = jax.random.PRNGKey(0)
    pkey, xkey, xkey2 = jax.random.split(key, 3)

    raw = init_params(pkey)
    params = pack_params(raw)

    # CartPole observation: 4 features; small batch of 8 (single grid step).
    x = jax.random.normal(xkey, (8, IN_F), jnp.float32)
    probs = jax.block_until_ready(cp0_forward(x, params))
    assert probs.shape == (8, 2)
    assert jnp.allclose(jnp.sum(probs, axis=1), 1.0, atol=1e-5)
    assert jnp.allclose(probs, cp0_reference(x, raw), atol=2e-2)

    # Non-power-of-2 batch to exercise the multi-step pipelined grid (2 steps).
    x2 = jax.random.normal(xkey2, (300, IN_F), jnp.float32)
    probs2 = jax.block_until_ready(cp0_forward(x2, params))
    assert probs2.shape == (300, 2)
    assert jnp.allclose(jnp.sum(probs2, axis=1), 1.0, atol=1e-5)
    assert jnp.allclose(probs2, cp0_reference(x2, raw), atol=2e-2)

    print("KERNEL_OK")
</pallas_src>

<mosaic_0001>
module attributes {stable_mosaic.version = 11 : i64} {
  func.func @cp0_kernel(%arg0: i32, %arg1: memref<8x128xf32, #tpu.memory_space<vmem>>, %arg2: memref<40x8xf32, #tpu.memory_space<vmem>>, %arg3: memref<40x40xf32, #tpu.memory_space<vmem>>, %arg4: memref<8x40xf32, #tpu.memory_space<vmem>>, %arg5: memref<2x128xf32, #tpu.memory_space<vmem>>) attributes {dimension_semantics = [#tpu.dimension_semantics<parallel>], iteration_bounds = array<i64: 1>, scalar_prefetch = 0 : i64, scratch_operands = 0 : i64, tpu.core_type = #tpu.core_type<tc>, window_params = [{transform_indices = @transform_0, window_bounds = array<i64: 8, 128>}, {pipeline_mode = #tpu.pipeline_mode<synchronous>, transform_indices = @transform_1, window_bounds = array<i64: 40, 8>}, {pipeline_mode = #tpu.pipeline_mode<synchronous>, transform_indices = @transform_2, window_bounds = array<i64: 40, 40>}, {pipeline_mode = #tpu.pipeline_mode<synchronous>, transform_indices = @transform_3, window_bounds = array<i64: 8, 40>}, {transform_indices = @transform_4, window_bounds = array<i64: 2, 128>}]} {
    %c0 = arith.constant 0 : index
    %c0_0 = arith.constant 0 : index
    %0 = vector.load %arg1[%c0, %c0_0] : memref<8x128xf32, #tpu.memory_space<vmem>>, vector<8x128xf32>
    %c0_1 = arith.constant 0 : index
    %c0_2 = arith.constant 0 : index
    %1 = vector.load %arg2[%c0_1, %c0_2] : memref<40x8xf32, #tpu.memory_space<vmem>>, vector<40x8xf32>
    %cst = arith.constant dense<0.000000e+00> : vector<40x128xf32>
    %2 = tpu.matmul %1, %0, %cst {dimension_numbers = #tpu.dot_dimension_numbers<[1], [0], [0], [1], [0, 0, 1, 1], [], []>} : vector<40x8xf32>, vector<8x128xf32>, vector<40x128xf32> -> vector<40x128xf32>
    %cst_3 = arith.constant 0.000000e+00 : f32
    %3 = vector.broadcast %cst_3 : f32 to vector<40x128xf32>
    %4 = arith.maximumf %2, %3 : vector<40x128xf32>
    %c0_4 = arith.constant 0 : index
    %c0_5 = arith.constant 0 : index
    %5 = vector.load %arg3[%c0_4, %c0_5] : memref<40x40xf32, #tpu.memory_space<vmem>>, vector<40x40xf32>
    %cst_6 = arith.constant dense<0.000000e+00> : vector<40x128xf32>
    %6 = tpu.matmul %5, %4, %cst_6 {dimension_numbers = #tpu.dot_dimension_numbers<[1], [0], [0], [1], [0, 0, 1, 1], [], []>} : vector<40x40xf32>, vector<40x128xf32>, vector<40x128xf32> -> vector<40x128xf32>
    %cst_7 = arith.constant 0.000000e+00 : f32
    %7 = vector.broadcast %cst_7 : f32 to vector<40x128xf32>
    %8 = arith.maximumf %6, %7 : vector<40x128xf32>
    %c0_8 = arith.constant 0 : index
    %c0_9 = arith.constant 0 : index
    %9 = vector.load %arg4[%c0_8, %c0_9] : memref<8x40xf32, #tpu.memory_space<vmem>>, vector<8x40xf32>
    %cst_10 = arith.constant dense<0.000000e+00> : vector<8x128xf32>
    %10 = tpu.matmul %9, %8, %cst_10 {dimension_numbers = #tpu.dot_dimension_numbers<[1], [0], [0], [1], [0, 0, 1, 1], [], []>} : vector<8x40xf32>, vector<40x128xf32>, vector<8x128xf32> -> vector<8x128xf32>
    %11 = vector.extract_strided_slice %10 {offsets = [0, 0], sizes = [1, 128], strides = [1, 1]} : vector<8x128xf32> to vector<1x128xf32>
    %cst_11 = arith.constant 0.000000e+00 : f32
    %12 = vector.broadcast %cst_11 : f32 to vector<1x128xf32>
    %13 = arith.subf %12, %11 : vector<1x128xf32>
    %14 = math.exp %13 : vector<1x128xf32>
    %cst_12 = arith.constant 1.000000e+00 : f32
    %15 = vector.broadcast %cst_12 : f32 to vector<1x128xf32>
    %16 = arith.addf %15, %14 : vector<1x128xf32>
    %cst_13 = arith.constant 1.000000e+00 : f32
    %17 = vector.broadcast %cst_13 : f32 to vector<1x128xf32>
    %18 = arith.divf %17, %16 : vector<1x128xf32>
    %cst_14 = arith.constant 1.000000e+00 : f32
    %19 = vector.broadcast %cst_14 : f32 to vector<1x128xf32>
    %20 = arith.subf %19, %18 : vector<1x128xf32>
    %21 = tpu.concatenate %18, %20 in 0 : vector<1x128xf32>, vector<1x128xf32> -> vector<2x128xf32>
    %c0_15 = arith.constant 0 : index
    %c0_16 = arith.constant 0 : index
    %22 = vector.load %arg5[%c0_15, %c0_16] : memref<2x128xf32, #tpu.memory_space<vmem>>, vector<2x128xf32>
    tpu.vector_store %arg5[%c0_15, %c0_16], %21 {strides = array<i32>} : memref<2x128xf32, #tpu.memory_space<vmem>>, vector<2x128xf32>,
    return
  }
  func.func @transform_0(%arg0: i32) -> (i32, i32) {
    %c0_i32 = arith.constant 0 : i32
    %c0_i32_0 = arith.constant 0 : i32
    return %c0_i32, %arg0 : i32, i32
  }
  func.func @transform_1(%arg0: i32) -> (i32, i32) {
    %c0_i32 = arith.constant 0 : i32
    %c0_i32_0 = arith.constant 0 : i32
    %c0_i32_1 = arith.constant 0 : i32
    return %c0_i32, %c0_i32_0 : i32, i32
  }
  func.func @transform_2(%arg0: i32) -> (i32, i32) {
    %c0_i32 = arith.constant 0 : i32
    %c0_i32_0 = arith.constant 0 : i32
    %c0_i32_1 = arith.constant 0 : i32
    return %c0_i32, %c0_i32_0 : i32, i32
  }
  func.func @transform_3(%arg0: i32) -> (i32, i32) {
    %c0_i32 = arith.constant 0 : i32
    %c0_i32_0 = arith.constant 0 : i32
    %c0_i32_1 = arith.constant 0 : i32
    return %c0_i32, %c0_i32_0 : i32, i32
  }
  func.func @transform_4(%arg0: i32) -> (i32, i32) {
    %c0_i32 = arith.constant 0 : i32
    %c0_i32_0 = arith.constant 0 : i32
    return %c0_i32, %arg0 : i32, i32
  }
}

</mosaic_0001>

<llo_original>
// kernel: tpu_custom_call.1
$region0: #{tpu_custom_call.1}
  #allocation0 [shape = 'u32[]', space=smem, size = 0x4, offset = 0x4, fixed_abs, tag = 'smem constant byte address 0x4 - core index']
  #allocation1 [shape = 'u32[144,128]{1,0:T(1,128)}', space=vmem, size = 0x12000, scoped, tag = 'internal scratch']
  %s0 = inlined_call_operand.vmem [shape: f32[8,128], index: 0, kind: input, shape index: {}]
  %s1 = inlined_call_operand.vmem [shape: f32[40,8], index: 1, kind: input, shape index: {}]
  %s2 = inlined_call_operand.vmem [shape: f32[40,40], index: 2, kind: input, shape index: {}]
  %s3 = inlined_call_operand.vmem [shape: f32[8,40], index: 3, kind: input, shape index: {}]
  %s4 = inlined_call_operand.hbm [shape: f32[2,128], index: 4, kind: output, shape index: {}]
  %s5 = sld [smem:[#allocation0]]
  $region26: #{tpu_custom_call.1} parent=0
    _
  %s7 = ssub.s32 1, %s5
  %s8 = scalar_select 0, %s7, %s5
  $region1: #{tpu_custom_call.1} parent=0
    #allocation2 [shape = 'u8[1024]{0}', space=vmem, size = 0x400, scoped, tag = 'output window, operand 0, single buffered']
    #allocation3 [shape = 's32[1]{0}', space=sflag, size = 0x4, scoped, tag = 'scoped memory for tpu_custom_call.1']
    %9 = vsyncpa [#allocation3], 0
    // Predicated region
    $region2: #{tpu_custom_call.1} parent=1 // pred_check
      _
    $region3: #{tpu_custom_call.1} parent=1 // pred_check_branch
      %11 = sbr.rel (0) target = $region5
    $region4: #{tpu_custom_call.1} parent=1 // pred_region
      _
    $region5: #{tpu_custom_call.1} parent=1 // pred_fallthru
      _
    // Predicated region
    $region6: #{tpu_custom_call.1} parent=1 // pred_check
      _
    $region7: #{tpu_custom_call.1} parent=1 // pred_check_branch
      %13 = sbr.rel (0) target = $region9
    $region8: #{tpu_custom_call.1} parent=1 // pred_region
      _
    $region9: #{tpu_custom_call.1} parent=1 // pred_fallthru
      _
    // Predicated region
    $region10: #{tpu_custom_call.1} parent=1 // pred_check
      _
    $region11: #{tpu_custom_call.1} parent=1 // pred_check_branch
      %15 = sbr.rel (0) target = $region13
    $region12: #{tpu_custom_call.1} parent=1 // pred_region
      _
    $region13: #{tpu_custom_call.1} parent=1 // pred_fallthru
      _
    // Predicated region
    $region14: #{tpu_custom_call.1} parent=1 // pred_check
      _
    $region15: #{tpu_custom_call.1} parent=1 // pred_check_branch
      %17 = sbr.rel (0) target = $region17
    $region16: #{tpu_custom_call.1} parent=1 // pred_region
      _
    $region17: #{tpu_custom_call.1} parent=1 // pred_fallthru
      _
    %v18 = vld [vmem:[%s0] sm:$0xff]
    %v19 = vld [vmem:[%s1] sm:$0xff]
    %v20 = vld [vmem:[%s1 + $0x8] sm:$0xff]
    %v21 = vld [vmem:[%s1 + $0x10] sm:$0xff]
    %v22 = vld [vmem:[%s1 + $0x18] sm:$0xff]
    %v23 = vld [vmem:[%s1 + $0x20] sm:$0xff]
    %vm24 = vcmask 64512
    %v26 = vsel %vm24, %v19, 0
    %v29 = vsel %vm24, %v20, 0
    %v32 = vsel %vm24, %v21, 0
    %v35 = vsel %vm24, %v22, 0
    %v38 = vsel %vm24, %v23, 0
    %40 = vmatprep.subr.mxu0 0.0
    %41 = vmatpush1.msra.mxu0 %v18
    %42 = vmatprep.subr.mxu0 0.0
    %43 = vmatpush1.msra.mxu0 0.0
    %44 = vmatprep.subr.mxu0 0.0
    %45 = vmatpush1.msra.mxu0 0.0
    %46 = vmatprep.subr.mxu0 0.0
    %47 = vmatpush1.msra.mxu0 0.0
    %48 = vmatprep.subr.mxu0 0.0
    %49 = vmatpush1.msra.mxu0 0.0
    %50 = vmatprep.subr.mxu0 0.0
    %51 = vmatpush1.msra.mxu0 0.0
    %52 = vmatprep.subr.mxu0 0.0
    %53 = vmatpush1.msra.mxu0 0.0
    %54 = vmatprep.subr.mxu0 0.0
    %55 = vmatpush1.msra.mxu0 0.0
    %56 = vmatprep.subr.mxu0 0.0
    %57 = vmatpush1.msra.mxu0 0.0
    %58 = vmatprep.subr.mxu0 0.0
    %59 = vmatpush1.msra.mxu0 0.0
    %60 = vmatprep.subr.mxu0 0.0
    %61 = vmatpush1.msra.mxu0 0.0
    %62 = vmatprep.subr.mxu0 0.0
    %63 = vmatpush1.msra.mxu0 0.0
    %64 = vmatprep.subr.mxu0 0.0
    %65 = vmatpush1.msra.mxu0 0.0
    %66 = vmatprep.subr.mxu0 0.0
    %67 = vmatpush1.msra.mxu0 0.0
    %68 = vmatprep.subr.mxu0 0.0
    %69 = vmatpush1.msra.mxu0 0.0
    %70 = vmatprep.subr.mxu0 0.0
    %71 = vmatpush1.msra.mxu0 0.0
    %72 = vmatprep.subr.mxu0 0.0
    %73 = vmatpush1.msra.mxu0 0.0
    %74 = vmatprep.subr.mxu0 0.0
    %75 = vmatpush1.msra.mxu0 0.0
    %76 = vmatprep.subr.mxu0 0.0
    %77 = vmatpush1.msra.mxu0 0.0
    %78 = vmatprep.subr.mxu0 0.0
    %79 = vmatpush1.msra.mxu0 0.0
    %80 = vmatprep.subr.mxu0 0.0
    %81 = vmatpush1.msra.mxu0 0.0
    %82 = vmatprep.subr.mxu0 0.0
    %83 = vmatpush1.msra.mxu0 0.0
    %84 = vmatprep.subr.mxu0 0.0
    %85 = vmatpush1.msra.mxu0 0.0
    %86 = vmatprep.subr.mxu0 0.0
    %87 = vmatpush1.msra.mxu0 0.0
    %88 = vmatprep.subr.mxu0 0.0
    %89 = vmatpush1.msra.mxu0 0.0
    %90 = vmatprep.subr.mxu0 0.0
    %91 = vmatpush1.msra.mxu0 0.0
    %92 = vmatprep.subr.mxu0 0.0
    %93 = vmatpush1.msra.mxu0 0.0
    %94 = vmatprep.subr.mxu0 0.0
    %95 = vmatpush1.msra.mxu0 0.0
    %96 = vmatprep.subr.mxu0 0.0
    %97 = vmatpush1.msra.mxu0 0.0
    %98 = vmatprep.subr.mxu0 0.0
    %99 = vmatpush1.msra.mxu0 0.0
    %100 = vmatprep.subr.mxu0 0.0
    %101 = vmatpush1.msra.mxu0 0.0
    %102 = vmatprep.subr.mxu0 0.0
    %103 = vmatpush1.msra.mxu0 0.0
    %104 = vmatprep.mubr.f32.mxu0 0.0
    %105 = vmatmul.mubr.f32.gmra.mrb[0].mxu0 %v26
    %v106 = vpop.f32.mrb[0].mxu0
    %v107 = vadd.f32 0.0, %v106
    %v108 = vpop.f32.mrb[0].mxu0
    %109 = vmatprep.mubr.f32.mxu0 0.0
    %110 = vmatmul.mubr.f32.gmra.mrb[0].mxu0 %v29
    %v111 = vpop.f32.mrb[0].mxu0
    %v112 = vadd.f32 0.0, %v111
    %v113 = vpop.f32.mrb[0].mxu0
    %114 = vmatprep.mubr.f32.mxu0 0.0
    %115 = vmatmul.mubr.f32.gmra.mrb[0].mxu0 %v32
    %v116 = vpop.f32.mrb[0].mxu0
    %v117 = vadd.f32 0.0, %v116
    %v118 = vpop.f32.mrb[0].mxu0
    %119 = vmatprep.mubr.f32.mxu0 0.0
    %120 = vmatmul.mubr.f32.gmra.mrb[0].mxu0 %v35
    %v121 = vpop.f32.mrb[0].mxu0
    %v122 = vadd.f32 0.0, %v121
    %v123 = vpop.f32.mrb[0].mxu0
    %124 = vmatprep.mubr.f32.mxu0 0.0
    %125 = vmatmul.mubr.f32.gmra.mrb[0].mxu0 %v38
    %v126 = vpop.f32.mrb[0].mxu0
    %v127 = vadd.f32 0.0, %v126
    %v128 = vpop.f32.mrb[0].mxu0
    %129 = vdwg.mxu0
    %v130 = vmax.f32 %v107, 0.0
    %v131 = vmax.f32 %v112, 0.0
    %v132 = vmax.f32 %v117, 0.0
    %v133 = vmax.f32 %v122, 0.0
    %v134 = vmax.f32 %v127, 0.0
    %v135 = vld [vmem:[%s2] sm:$0xff]
    %v136 = vld [vmem:[%s2 + $0x8] sm:$0xff]
    %v137 = vld [vmem:[%s2 + $0x10] sm:$0xff]
    %v138 = vld [vmem:[%s2 + $0x18] sm:$0xff]
    %v139 = vld [vmem:[%s2 + $0x20] sm:$0xff]
    %vm140 = vcmask 326656
    %v142 = vsel %vm140, %v135, 0
    %v145 = vsel %vm140, %v136, 0
    %v148 = vsel %vm140, %v137, 0
    %v151 = vsel %vm140, %v138, 0
    %v154 = vsel %vm140, %v139, 0
    %156 = vmatprep.subr.mxu0 0.0
    %157 = vmatpush1.msra.mxu0 %v130
    %158 = vmatprep.subr.mxu0 0.0
    %159 = vmatpush1.msra.mxu0 %v131
    %160 = vmatprep.subr.mxu0 0.0
    %161 = vmatpush1.msra.mxu0 %v132
    %162 = vmatprep.subr.mxu0 0.0
    %163 = vmatpush1.msra.mxu0 %v133
    %164 = vmatprep.subr.mxu0 0.0
    %165 = vmatpush1.msra.mxu0 %v134
    %166 = vmatprep.subr.mxu0 0.0
    %167 = vmatpush1.msra.mxu0 0.0
    %168 = vmatprep.subr.mxu0 0.0
    %169 = vmatpush1.msra.mxu0 0.0
    %170 = vmatprep.subr.mxu0 0.0
    %171 = vmatpush1.msra.mxu0 0.0
    %172 = vmatprep.subr.mxu0 0.0
    %173 = vmatpush1.msra.mxu0 0.0
    %174 = vmatprep.subr.mxu0 0.0
    %175 = vmatpush1.msra.mxu0 0.0
    %176 = vmatprep.subr.mxu0 0.0
    %177 = vmatpush1.msra.mxu0 0.0
    %178 = vmatprep.subr.mxu0 0.0
    %179 = vmatpush1.msra.mxu0 0.0
    %180 = vmatprep.subr.mxu0 0.0
    %181 = vmatpush1.msra.mxu0 0.0
    %182 = vmatprep.subr.mxu0 0.0
    %183 = vmatpush1.msra.mxu0 0.0
    %184 = vmatprep.subr.mxu0 0.0
    %185 = vmatpush1.msra.mxu0 0.0
    %186 = vmatprep.subr.mxu0 0.0
    %187 = vmatpush1.msra.mxu0 0.0
    %188 = vmatprep.subr.mxu0 0.0
    %189 = vmatpush1.msra.mxu0 0.0
    %190 = vmatprep.subr.mxu0 0.0
    %191 = vmatpush1.msra.mxu0 0.0
    %192 = vmatprep.subr.mxu0 0.0
    %193 = vmatpush1.msra.mxu0 0.0
    %194 = vmatprep.subr.mxu0 0.0
    %195 = vmatpush1.msra.mxu0 0.0
    %196 = vmatprep.subr.mxu0 0.0
    %197 = vmatpush1.msra.mxu0 0.0
    %198 = vmatprep.subr.mxu0 0.0
    %199 = vmatpush1.msra.mxu0 0.0
    %200 = vmatprep.subr.mxu0 0.0
    %201 = vmatpush1.msra.mxu0 0.0
    %202 = vmatprep.subr.mxu0 0.0
    %203 = vmatpush1.msra.mxu0 0.0
    %204 = vmatprep.subr.mxu0 0.0
    %205 = vmatpush1.msra.mxu0 0.0
    %206 = vmatprep.subr.mxu0 0.0
    %207 = vmatpush1.msra.mxu0 0.0
    %208 = vmatprep.subr.mxu0 0.0
    %209 = vmatpush1.msra.mxu0 0.0
    %210 = vmatprep.subr.mxu0 0.0
    %211 = vmatpush1.msra.mxu0 0.0
    %212 = vmatprep.subr.mxu0 0.0
    %213 = vmatpush1.msra.mxu0 0.0
    %214 = vmatprep.subr.mxu0 0.0
    %215 = vmatpush1.msra.mxu0 0.0
    %216 = vmatprep.subr.mxu0 0.0
    %217 = vmatpush1.msra.mxu0 0.0
    %218 = vmatprep.subr.mxu0 0.0
    %219 = vmatpush1.msra.mxu0 0.0
    %220 = vmatprep.mubr.f32.mxu0 0.0
    %221 = vmatmul.mubr.f32.gmra.mrb[0].mxu0 %v142
    %v222 = vpop.f32.mrb[0].mxu0
    %v223 = vadd.f32 0.0, %v222
    %v224 = vpop.f32.mrb[0].mxu0
    %225 = vmatprep.mubr.f32.mxu0 0.0
    %226 = vmatmul.mubr.f32.gmra.mrb[0].mxu0 %v145
    %v227 = vpop.f32.mrb[0].mxu0
    %v228 = vadd.f32 0.0, %v227
    %v229 = vpop.f32.mrb[0].mxu0
    %230 = vmatprep.mubr.f32.mxu0 0.0
    %231 = vmatmul.mubr.f32.gmra.mrb[0].mxu0 %v148
    %v232 = vpop.f32.mrb[0].mxu0
    %v233 = vadd.f32 0.0, %v232
    %v234 = vpop.f32.mrb[0].mxu0
    %235 = vmatprep.mubr.f32.mxu0 0.0
    %236 = vmatmul.mubr.f32.gmra.mrb[0].mxu0 %v151
    %v237 = vpop.f32.mrb[0].mxu0
    %v238 = vadd.f32 0.0, %v237
    %v239 = vpop.f32.mrb[0].mxu0
    %240 = vmatprep.mubr.f32.mxu0 0.0
    %241 = vmatmul.mubr.f32.gmra.mrb[0].mxu0 %v154
    %v242 = vpop.f32.mrb[0].mxu0
    %v243 = vadd.f32 0.0, %v242
    %v244 = vpop.f32.mrb[0].mxu0
    %245 = vdwg.mxu0
    %v246 = vmax.f32 %v223, 0.0
    %v247 = vmax.f32 %v228, 0.0
    %v248 = vmax.f32 %v233, 0.0
    %v249 = vmax.f32 %v238, 0.0
    %v250 = vmax.f32 %v243, 0.0
    %v251 = vld [vmem:[%s3] sm:$0xff]
    %v253 = vsel %vm140, %v251, 0
    %255 = vmatprep.subr.mxu0 0.0
    %256 = vmatpush1.msra.mxu0 %v246
    %257 = vmatprep.subr.mxu0 0.0
    %258 = vmatpush1.msra.mxu0 %v247
    %259 = vmatprep.subr.mxu0 0.0
    %260 = vmatpush1.msra.mxu0 %v248
    %261 = vmatprep.subr.mxu0 0.0
    %262 = vmatpush1.msra.mxu0 %v249
    %263 = vmatprep.subr.mxu0 0.0
    %264 = vmatpush1.msra.mxu0 %v250
    %265 = vmatprep.subr.mxu0 0.0
    %266 = vmatpush1.msra.mxu0 0.0
    %267 = vmatprep.subr.mxu0 0.0
    %268 = vmatpush1.msra.mxu0 0.0
    %269 = vmatprep.subr.mxu0 0.0
    %270 = vmatpush1.msra.mxu0 0.0
    %271 = vmatprep.subr.mxu0 0.0
    %272 = vmatpush1.msra.mxu0 0.0
    %273 = vmatprep.subr.mxu0 0.0
    %274 = vmatpush1.msra.mxu0 0.0
    %275 = vmatprep.subr.mxu0 0.0
    %276 = vmatpush1.msra.mxu0 0.0
    %277 = vmatprep.subr.mxu0 0.0
    %278 = vmatpush1.msra.mxu0 0.0
    %279 = vmatprep.subr.mxu0 0.0
    %280 = vmatpush1.msra.mxu0 0.0
    %281 = vmatprep.subr.mxu0 0.0
    %282 = vmatpush1.msra.mxu0 0.0
    %283 = vmatprep.subr.mxu0 0.0
    %284 = vmatpush1.msra.mxu0 0.0
    %285 = vmatprep.subr.mxu0 0.0
    %286 = vmatpush1.msra.mxu0 0.0
    %287 = vmatprep.subr.mxu0 0.0
    %288 = vmatpush1.msra.mxu0 0.0
    %289 = vmatprep.subr.mxu0 0.0
    %290 = vmatpush1.msra.mxu0 0.0
    %291 = vmatprep.subr.mxu0 0.0
    %292 = vmatpush1.msra.mxu0 0.0
    %293 = vmatprep.subr.mxu0 0.0
    %294 = vmatpush1.msra.mxu0 0.0
    %295 = vmatprep.subr.mxu0 0.0
    %296 = vmatpush1.msra.mxu0 0.0
    %297 = vmatprep.subr.mxu0 0.0
    %298 = vmatpush1.msra.mxu0 0.0
    %299 = vmatprep.subr.mxu0 0.0
    %300 = vmatpush1.msra.mxu0 0.0
    %301 = vmatprep.subr.mxu0 0.0
    %302 = vmatpush1.msra.mxu0 0.0
    %303 = vmatprep.subr.mxu0 0.0
    %304 = vmatpush1.msra.mxu0 0.0
    %305 = vmatprep.subr.mxu0 0.0
    %306 = vmatpush1.msra.mxu0 0.0
    %307 = vmatprep.subr.mxu0 0.0
    %308 = vmatpush1.msra.mxu0 0.0
    %309 = vmatprep.subr.mxu0 0.0
    %310 = vmatpush1.msra.mxu0 0.0
    %311 = vmatprep.subr.mxu0 0.0
    %312 = vmatpush1.msra.mxu0 0.0
    %313 = vmatprep.subr.mxu0 0.0
    %314 = vmatpush1.msra.mxu0 0.0
    %315 = vmatprep.subr.mxu0 0.0
    %316 = vmatpush1.msra.mxu0 0.0
    %317 = vmatprep.subr.mxu0 0.0
    %318 = vmatpush1.msra.mxu0 0.0
    %319 = vmatprep.mubr.f32.mxu0 0.0
    %320 = vmatmul.mubr.f32.gmra.mrb[0].mxu0 %v253
    %v321 = vpop.f32.mrb[0].mxu0
    %v322 = vadd.f32 0.0, %v321
    %v323 = vpop.f32.mrb[0].mxu0
    %324 = vdwg.mxu0
    %v325 = vsub.f32 0.0, %v322
    %v326 = vmul.f32 %v325, 1.442695
    %v327 = vpow.pop %v326
    %v328 = vadd.f32 %v327, 1.0
    %v329 = vrcp.pop %v328
    %v330 = vmul.f32 1.0, %v329
    %v331 = vsub.f32 1.0, %v330
    %v333 = vrot.slane %v331, 7
    %vm335 = vcmask 1040384
    %v336 = vsel %vm335, %v330, %v333
    %337 = vst [vmem:[#allocation2] sm:$0x3] %v336
    // Predicated region
    $region18: #{tpu_custom_call.1} parent=1 // pred_check
      _
    $region19: #{tpu_custom_call.1} parent=1 // pred_check_branch
      %339 = sbr.rel (0) target = $region21
    $region20: #{tpu_custom_call.1} parent=1 // pred_region
      %s341 = ssub.s32 32, 32
      %342 = vsyncadd [#allocation3], %s341
      %s344 = sshll.u32 [#allocation2], 4
      %s345 = int_to_ptr.vmem [resolvable:$true] %s344
      %347 = dma.vmem_to_hbm [thread:$0]  %s345, 32, %s4, [#allocation3]
    $region21: #{tpu_custom_call.1} parent=1 // pred_fallthru
      _
    // Predicated region
    $region22: #{tpu_custom_call.1} parent=1 // pred_check
      _
    $region23: #{tpu_custom_call.1} parent=1 // pred_check_branch
      %349 = sbr.rel (0) target = $region25
    $region24: #{tpu_custom_call.1} parent=1 // pred_region
      %350 = dma.done [#allocation3], 32
    $region25: #{tpu_custom_call.1} parent=1 // pred_fallthru
      _
    %351 = vsyncpa [#allocation3], 1

</llo_original>
